<compile_context>
chip_gen: v7x
topology: tpu7x:2x2x1
jax: 0.10.0
libtpu: 0.0.40
codegen_flags: <defaults>
</compile_context>

<pallas_src>
import functools
import math

import jax
import jax.numpy as jnp
from jax import lax
from jax.experimental import pallas as pl
from jax.experimental.pallas import tpu as pltpu


# ----------------------------------------------------------------------------
# helpers
# ----------------------------------------------------------------------------
def _round_up(x, m):
    return (x + m - 1) // m * m


def _pick_n_tile(dim, target=512, align=128):
    """Largest multiple of `align` <= target that divides `dim`; else full."""
    if dim <= target:
        return dim
    t = (target // align) * align
    while t >= align:
        if dim % t == 0:
            return t
        t -= align
    return dim


def _token_tile(T, target=256):
    if T >= target:
        return target
    return _round_up(max(T, 8), 8)


# ----------------------------------------------------------------------------
# single-shot-K tiled linear:  out = x @ w + b
# ----------------------------------------------------------------------------
def _linear_kernel(x_ref, w_ref, b_ref, o_ref):
    acc = jnp.dot(x_ref[...], w_ref[...], preferred_element_type=jnp.float32)
    o_ref[...] = (acc + b_ref[...].astype(jnp.float32)).astype(o_ref.dtype)


def _linear(x, w, b, *, tm, tn_target=512):
    """x: (M, K), w: (K, N), b: (N,) -> (M, N).  Whole K per block."""
    M, K = x.shape
    N = w.shape[1]
    tn = _pick_n_tile(N, tn_target)
    return pl.pallas_call(
        _linear_kernel,
        out_shape=jax.ShapeDtypeStruct((M, N), x.dtype),
        grid_spec=pltpu.PrefetchScalarGridSpec(
            num_scalar_prefetch=0,
            grid=(M // tm, N // tn),
            in_specs=[
                pl.BlockSpec((tm, K), lambda i, j: (i, 0)),
                pl.BlockSpec((K, tn), lambda i, j: (0, j)),
                pl.BlockSpec((1, tn), lambda i, j: (0, j)),
            ],
            out_specs=pl.BlockSpec((tm, tn), lambda i, j: (i, j))),
        compiler_params=pltpu.CompilerParams(
            dimension_semantics=("parallel", "parallel")),
    )(x, w, b.reshape(1, N))


# ----------------------------------------------------------------------------
# fused RoPE(q, k) + v pass-through + (T, 3, H, D) -> head-major split
#   (replaces the old HBM transpose + two separate RoPE passes)
# ----------------------------------------------------------------------------
def _rope_split_kernel(qkv_ref, cos_ref, sin_ref, q_out, k_out, v_out, *,
                       num_heads, head_dim, proj_size, q_scale):
    c = cos_ref[...]                        # (tt, D/2) f32
    s = sin_ref[...]
    half = head_dim // 2

    def rot(t):
        t = t.astype(jnp.float32)
        t1 = t[:, :half]
        t2 = t[:, half:]
        return jnp.concatenate([t1 * c - t2 * s, t2 * c + t1 * s], axis=-1)

    for h in range(num_heads):              # static unroll (H is small)
        c0 = h * head_dim
        qh = qkv_ref[:, c0:c0 + head_dim]
        kh = qkv_ref[:, proj_size + c0:proj_size + c0 + head_dim]
        vh = qkv_ref[:, 2 * proj_size + c0:2 * proj_size + c0 + head_dim]
        q_out[h, :, :] = (rot(qh) * q_scale).astype(q_out.dtype)
        k_out[h, :, :] = rot(kh).astype(k_out.dtype)
        v_out[h, :, :] = vh


def _rope_split(qkv2, cos_half, sin_half, *, num_heads, head_dim, tt, q_scale):
    Tp, threeP = qkv2.shape
    P = threeP // 3
    H, D = num_heads, head_dim
    kern = functools.partial(_rope_split_kernel, num_heads=H, head_dim=D,
                             proj_size=P, q_scale=q_scale)
    out_sh = jax.ShapeDtypeStruct((H, Tp, D), qkv2.dtype)
    return pl.pallas_call(
        kern,
        out_shape=(out_sh, out_sh, out_sh),
        grid_spec=pltpu.PrefetchScalarGridSpec(
            num_scalar_prefetch=0,
            grid=(Tp // tt,),
            in_specs=[
                pl.BlockSpec((tt, threeP), lambda i: (i, 0)),
                pl.BlockSpec((tt, D // 2), lambda i: (i, 0)),
                pl.BlockSpec((tt, D // 2), lambda i: (i, 0)),
            ],
            out_specs=(
                pl.BlockSpec((H, tt, D), lambda i: (0, i, 0)),
                pl.BlockSpec((H, tt, D), lambda i: (0, i, 0)),
                pl.BlockSpec((H, tt, D), lambda i: (0, i, 0)),
            )),
        compiler_params=pltpu.CompilerParams(
            dimension_semantics=("parallel",)),
    )(qkv2, cos_half, sin_half)


# ----------------------------------------------------------------------------
# flash-style varlen attention with kv-tile skipping
#   scalar prefetch: per-q-tile inclusive kv tile range [kv_lo, kv_hi]
# ----------------------------------------------------------------------------
def _flash_kernel(kv_lo_ref, kv_hi_ref, q_ref, k_ref, v_ref,
                  segq_ref, segk_ref, o_ref, m_sc, l_sc, acc_sc):
    qi = pl.program_id(1)
    ki = pl.program_id(2)
    lo = kv_lo_ref[qi]
    hi = kv_hi_ref[qi]

    @pl.when(ki == lo)
    def _init():
        m_sc[...] = jnp.full_like(m_sc, -jnp.inf)
        l_sc[...] = jnp.zeros_like(l_sc)
        acc_sc[...] = jnp.zeros_like(acc_sc)

    @pl.when(jnp.logical_and(ki >= lo, ki <= hi))
    def _compute():
        q = q_ref[0]                                  # (tq, D), scaled+rotated
        k = k_ref[0]                                  # (tkv, D)
        s = lax.dot_general(q, k, (((1,), (1,)), ((), ())),
                            preferred_element_type=jnp.float32)  # (tq, tkv)

        # block-diagonal varlen mask from segment ids
        mask = segq_ref[...] == segk_ref[...]         # (tq,1)==(1,tkv)
        s = jnp.where(mask, s, -1e30)

        m_prev = m_sc[...]                            # (tq, 1)
        m_new = jnp.maximum(m_prev, jnp.max(s, axis=-1, keepdims=True))
        alpha = jnp.exp(m_prev - m_new)
        p = jnp.exp(s - m_new)
        l_sc[...] = alpha * l_sc[...] + jnp.sum(p, axis=-1, keepdims=True)
        acc_sc[...] = alpha * acc_sc[...] + jnp.dot(
            p.astype(v_ref.dtype), v_ref[0],
            preferred_element_type=jnp.float32)
        m_sc[...] = m_new

    @pl.when(ki == hi)
    def _fin():
        inv = pl.reciprocal(l_sc[...], approx=True)
        o_ref[0] = (acc_sc[...] * inv).astype(o_ref.dtype)


def _flash_attention(q, k, v, seg_col, seg_row, kv_lo, kv_hi, *, tq, tkv):
    """q/k/v: (H, Tp, D); seg_col: (Tp,1); seg_row: (1,Tp); kv_lo/hi: (nq,)."""
    H, Tp, D = q.shape
    nq = Tp // tq
    nkv = Tp // tkv

    def q_map(h, qi, ki, lo_ref, hi_ref):
        return (h, qi, 0)

    def kv_map(h, qi, ki, lo_ref, hi_ref):
        kc = jnp.minimum(jnp.maximum(ki, lo_ref[qi]), hi_ref[qi])
        return (h, kc, 0)

    def segq_map(h, qi, ki, lo_ref, hi_ref):
        return (qi, 0)

    def segk_map(h, qi, ki, lo_ref, hi_ref):
        kc = jnp.minimum(jnp.maximum(ki, lo_ref[qi]), hi_ref[qi])
        return (0, kc)

    def o_map(h, qi, ki, lo_ref, hi_ref):
        return (h, qi, 0)

    return pl.pallas_call(
        _flash_kernel,
        out_shape=jax.ShapeDtypeStruct((H, Tp, D), q.dtype),
        grid_spec=pltpu.PrefetchScalarGridSpec(
            num_scalar_prefetch=2,
            grid=(H, nq, nkv),
            in_specs=[
                pl.BlockSpec((1, tq, D), q_map),
                pl.BlockSpec((1, tkv, D), kv_map),
                pl.BlockSpec((1, tkv, D), kv_map),
                pl.BlockSpec((tq, 1), segq_map),
                pl.BlockSpec((1, tkv), segk_map),
            ],
            out_specs=pl.BlockSpec((1, tq, D), o_map),
            scratch_shapes=[pltpu.VMEM((tq, 1), jnp.float32),
                            pltpu.VMEM((tq, 1), jnp.float32),
                            pltpu.VMEM((tq, D), jnp.float32)]),
        compiler_params=pltpu.CompilerParams(
            dimension_semantics=("parallel", "parallel", "arbitrary")),
    )(kv_lo, kv_hi, q, k, v, seg_col, seg_row)


# ----------------------------------------------------------------------------
# output projection that consumes head-major (H, T, D) directly:
#   out[t, n] = sum_h attn[h, t, :] @ wproj[h*D:(h+1)*D, n] + b[n]
# (the 'h (b s) d -> (b s) (h d)' transpose becomes a reduction axis)
# ----------------------------------------------------------------------------
def _proj_kernel(a_ref, w_ref, b_ref, o_ref, acc_ref):
    h = pl.program_id(2)

    @pl.when(h == 0)
    def _init():
        acc_ref[...] = jnp.zeros_like(acc_ref)

    acc_ref[...] += jnp.dot(a_ref[0], w_ref[0],
                            preferred_element_type=jnp.float32)

    @pl.when(h == pl.num_programs(2) - 1)
    def _fin():
        o_ref[...] = (acc_ref[...] + b_ref[...].astype(jnp.float32)
                      ).astype(o_ref.dtype)


def _proj_linear(attn, w3, b, *, tm, tn_target=512):
    """attn: (H, Tp, D); w3: (H, D, E) view of (H*D, E); b: (E,) -> (Tp, E)."""
    H, Tp, D = attn.shape
    E = w3.shape[2]
    tn = _pick_n_tile(E, tn_target)
    return pl.pallas_call(
        _proj_kernel,
        out_shape=jax.ShapeDtypeStruct((Tp, E), attn.dtype),
        grid_spec=pltpu.PrefetchScalarGridSpec(
            num_scalar_prefetch=0,
            grid=(Tp // tm, E // tn, H),
            in_specs=[
                pl.BlockSpec((1, tm, D), lambda i, j, h: (h, i, 0)),
                pl.BlockSpec((1, D, tn), lambda i, j, h: (h, 0, j)),
                pl.BlockSpec((1, tn), lambda i, j, h: (0, j)),
            ],
            out_specs=pl.BlockSpec((tm, tn), lambda i, j, h: (i, j)),
            scratch_shapes=[pltpu.VMEM((tm, tn), jnp.float32)]),
        compiler_params=pltpu.CompilerParams(
            dimension_semantics=("parallel", "parallel", "arbitrary")),
    )(attn, w3, b.reshape(1, E))


# ----------------------------------------------------------------------------
# module wrapper (glue in plain JAX, hot path in Pallas)
# ----------------------------------------------------------------------------
def qwen2_5_vision_attention(x, cu_seqlens, rotary_pos_emb, params,
                             num_heads, max_seqlen=None):
    """x: (S, B, E); cu_seqlens: (nseg+1,) int32 over '(b s)' tokens;
    rotary_pos_emb: (S, head_dim // 2) angles.  Returns (S, B, E)."""
    del max_seqlen                      # scheduling hint only
    wqkv, bqkv, wproj, bproj = params
    S, B, E = x.shape
    threeP = wqkv.shape[1]
    P = threeP // 3
    H = num_heads
    D = P // H
    T = B * S

    # tokens in '(b s)' order (free for B == 1)
    x_tok = jnp.transpose(x, (1, 0, 2)).reshape(T, E)

    # pad token axis to an aligned tile size (no degenerate tiles)
    tq = _token_tile(T)
    tkv = tq
    Tp = _round_up(T, tq)
    if Tp > T:
        x_tok = jnp.pad(x_tok, ((0, Tp - T), (0, 0)))

    # qkv projection (ColumnParallelLinear, tp_size == 1)
    qkv = _linear(x_tok, wqkv, bqkv, tm=tq)                  # (Tp, 3P)

    # rotary tables per token ('(b s)' order -> position = t % S)
    pos = jnp.arange(Tp, dtype=jnp.int32) % S
    freqs = rotary_pos_emb.astype(jnp.float32)               # (S, D/2)
    cos_half = jnp.cos(freqs)[pos]                           # (Tp, D/2)
    sin_half = jnp.sin(freqs)[pos]

    # fused RoPE + split to head-major; 1/sqrt(D) folded into q here
    q, k, v = _rope_split(qkv, cos_half, sin_half, num_heads=H, head_dim=D,
                          tt=tq, q_scale=1.0 / math.sqrt(D))  # 3x (H, Tp, D)

    # segment ids (padded tokens -> sentinel segment of their own)
    cu = cu_seqlens.astype(jnp.int32)
    nseg = cu.shape[0] - 1
    sentinel = jnp.int32(nseg + 1)
    tok = jnp.arange(Tp, dtype=jnp.int32)
    seg = jnp.where(
        tok < T,
        (jnp.searchsorted(cu, tok, side="right") - 1).astype(jnp.int32),
        sentinel)

    # per-q-tile inclusive kv tile range (block-diagonal mask => tile skipping)
    cu_ext = jnp.concatenate([cu, jnp.array([T, Tp], dtype=jnp.int32)])
    nq = Tp // tq
    seg_tiles = seg.reshape(nq, tq)
    qmin = seg_tiles[:, 0]                  # seg is monotone in '(b s)' order
    qmax = seg_tiles[:, -1]
    kv_lo = (cu_ext[qmin] // tkv).astype(jnp.int32)
    kv_hi = ((cu_ext[qmax + 1] - 1) // tkv).astype(jnp.int32)

    attn = _flash_attention(q, k, v, seg.reshape(Tp, 1), seg.reshape(1, Tp),
                            kv_lo, kv_hi, tq=tq, tkv=tkv)    # (H, Tp, D)

    # output projection (RowParallelLinear, tp_size == 1), head axis fused
    w3 = wproj.reshape(H, D, E)
    out_tok = _proj_linear(attn, w3, bproj, tm=tq)           # (Tp, E)

    out = out_tok[:T].reshape(B, S, E)
    return jnp.transpose(out, (1, 0, 2))                     # (S, B, E)


# ----------------------------------------------------------------------------
# pure-JAX reference for verification
# ----------------------------------------------------------------------------
def reference(x, cu_seqlens, freqs, params, num_heads):
    wqkv, bqkv, wproj, bproj = params
    S, B, E = x.shape
    P = wqkv.shape[1] // 3
    H, D = num_heads, P // num_heads

    qkv = (x.reshape(S * B, E) @ wqkv + bqkv).reshape(S, B, 3 * P)
    q, k, v = jnp.split(qkv, 3, axis=2)
    q, k, v = (t.reshape(S, B, H, D).transpose(1, 0, 2, 3) for t in (q, k, v))

    cos = jnp.concatenate([jnp.cos(freqs)] * 2, -1)[None, :, None, :]
    sin = jnp.concatenate([jnp.sin(freqs)] * 2, -1)[None, :, None, :]

    def rope(t):
        t1, t2 = t[..., : D // 2], t[..., D // 2:]
        return t * cos + jnp.concatenate([-t2, t1], -1) * sin

    q, k = rope(q), rope(k)
    qf, kf, vf = (t.reshape(B * S, H, D) for t in (q, k, v))

    tok = jnp.arange(B * S)
    seg = jnp.searchsorted(cu_seqlens, tok, side="right") - 1
    mask = seg[:, None] == seg[None, :]

    scores = jnp.einsum("qhd,khd->hqk", qf, kf) / jnp.sqrt(1.0 * D)
    scores = jnp.where(mask[None], scores, -1e30)
    p = jax.nn.softmax(scores, axis=-1)
    o = jnp.einsum("hqk,khd->qhd", p, vf)

    ctx = o.reshape(B, S, H * D).transpose(1, 0, 2).reshape(S * B, H * D)
    return (ctx @ wproj + bproj).reshape(S, B, E)


def _run_case(key, seq_len, batch, embed_dim, num_heads, projection_size,
              cu_list):
    head_dim = projection_size // num_heads
    kx, kf, k1, k2, k3, k4 = jax.random.split(key, 6)

    x = jax.random.normal(kx, (seq_len, batch, embed_dim), dtype=jnp.float32)
    rotary_pos_emb = jax.random.uniform(kf, (seq_len, head_dim // 2),
                                        dtype=jnp.float32, maxval=2.0)
    cu_seqlens = jnp.array(cu_list, dtype=jnp.int32)

    wqkv = 0.05 * jax.random.normal(
        k1, (embed_dim, 3 * projection_size), jnp.float32)
    bqkv = 0.05 * jax.random.normal(k2, (3 * projection_size,), jnp.float32)
    wproj = 0.05 * jax.random.normal(
        k3, (projection_size, embed_dim), jnp.float32)
    bproj = 0.05 * jax.random.normal(k4, (embed_dim,), jnp.float32)
    params = (wqkv, bqkv, wproj, bproj)

    out = qwen2_5_vision_attention(x, cu_seqlens, rotary_pos_emb, params,
                                   num_heads, max_seqlen=int(cu_list[-1]))
    out = jax.block_until_ready(out)

    ref = reference(x, cu_seqlens, rotary_pos_emb, params, num_heads)
    assert out.shape == (seq_len, batch, embed_dim)
    assert jnp.allclose(out, ref, rtol=2e-3, atol=2e-3), "mismatch vs reference"


# ----------------------------------------------------------------------------
if __name__ == "__main__":
    key = jax.random.PRNGKey(0)
    k_a, k_b = jax.random.split(key, 2)

    # small case: exercises token padding + single-tile path
    _run_case(k_a, seq_len=12, batch=1, embed_dim=32, num_heads=2,
              projection_size=32, cu_list=[0, 5, 12])

    # moderate case: exercises multi-tile grid, kv tile skipping and padding
    _run_case(k_b, seq_len=640, batch=1, embed_dim=64, num_heads=4,
              projection_size=256, cu_list=[0, 300, 640])

    print("KERNEL_OK")
</pallas_src>

<mosaic_0001>
module attributes {stable_mosaic.version = 11 : i64} {
  func.func @_linear_kernel(%arg0: i32, %arg1: i32, %arg2: memref<16x32xf32, #tpu.memory_space<vmem>>, %arg3: memref<32x96xf32, #tpu.memory_space<vmem>>, %arg4: memref<1x96xf32, #tpu.memory_space<vmem>>, %arg5: memref<16x96xf32, #tpu.memory_space<vmem>>) attributes {dimension_semantics = [#tpu.dimension_semantics<parallel>, #tpu.dimension_semantics<parallel>], iteration_bounds = array<i64: 1, 1>, scalar_prefetch = 0 : i64, scratch_operands = 0 : i64, tpu.core_type = #tpu.core_type<tc>, window_params = [{transform_indices = @transform_0, window_bounds = array<i64: 16, 32>}, {transform_indices = @transform_1, window_bounds = array<i64: 32, 96>}, {transform_indices = @transform_2, window_bounds = array<i64: 1, 96>}, {transform_indices = @transform_3, window_bounds = array<i64: 16, 96>}]} {
    %c0 = arith.constant 0 : index
    %c0_0 = arith.constant 0 : index
    %0 = vector.load %arg2[%c0, %c0_0] : memref<16x32xf32, #tpu.memory_space<vmem>>, vector<16x32xf32>
    %c0_1 = arith.constant 0 : index
    %c0_2 = arith.constant 0 : index
    %1 = vector.load %arg3[%c0_1, %c0_2] : memref<32x96xf32, #tpu.memory_space<vmem>>, vector<32x96xf32>
    %cst = arith.constant dense<0.000000e+00> : vector<16x96xf32>
    %2 = tpu.matmul %0, %1, %cst {dimension_numbers = #tpu.dot_dimension_numbers<[1], [0], [0], [1], [0, 0, 1, 1], [], []>} : vector<16x32xf32>, vector<32x96xf32>, vector<16x96xf32> -> vector<16x96xf32>
    %c0_3 = arith.constant 0 : index
    %c0_4 = arith.constant 0 : index
    %3 = vector.load %arg4[%c0_3, %c0_4] : memref<1x96xf32, #tpu.memory_space<vmem>>, vector<1x96xf32>
    %4 = vector.broadcast %3 : vector<1x96xf32> to vector<16x96xf32>
    %5 = arith.addf %2, %4 : vector<16x96xf32>
    %c0_5 = arith.constant 0 : index
    %c0_6 = arith.constant 0 : index
    %6 = vector.load %arg5[%c0_5, %c0_6] : memref<16x96xf32, #tpu.memory_space<vmem>>, vector<16x96xf32>
    tpu.vector_store %arg5[%c0_5, %c0_6], %5 {strides = array<i32>} : memref<16x96xf32, #tpu.memory_space<vmem>>, vector<16x96xf32>,
    return
  }
  func.func @transform_0(%arg0: i32, %arg1: i32) -> (i32, i32) {
    %c0_i32 = arith.constant 0 : i32
    %c0_i32_0 = arith.constant 0 : i32
    return %arg0, %c0_i32 : i32, i32
  }
  func.func @transform_1(%arg0: i32, %arg1: i32) -> (i32, i32) {
    %c0_i32 = arith.constant 0 : i32
    %c0_i32_0 = arith.constant 0 : i32
    return %c0_i32, %arg1 : i32, i32
  }
  func.func @transform_2(%arg0: i32, %arg1: i32) -> (i32, i32) {
    %c0_i32 = arith.constant 0 : i32
    %c0_i32_0 = arith.constant 0 : i32
    return %c0_i32, %arg1 : i32, i32
  }
  func.func @transform_3(%arg0: i32, %arg1: i32) -> (i32, i32) {
    %c0_i32 = arith.constant 0 : i32
    return %arg0, %arg1 : i32, i32
  }
}

</mosaic_0001>

<llo_original>
// kernel: tpu_custom_call.1
$region0: #{tpu_custom_call.1}
  #allocation0 [shape = 'u32[]', space=smem, size = 0x4, offset = 0x4, fixed_abs, tag = 'smem constant byte address 0x4 - core index']
  #allocation1 [shape = 'u32[144,128]{1,0:T(1,128)}', space=vmem, size = 0x12000, scoped, tag = 'internal scratch']
  %s0 = inlined_call_operand.hbm [shape: f32[16,32], index: 0, kind: input, shape index: {}]
  %s1 = inlined_call_operand.hbm [shape: f32[32,96], index: 1, kind: input, shape index: {}]
  %s2 = inlined_call_operand.vmem [shape: f32[1,96], index: 2, kind: input, shape index: {}]
  %s3 = inlined_call_operand.hbm [shape: f32[16,96], index: 3, kind: output, shape index: {}]
  %s4 = sld [smem:[#allocation0]]
  $region30: #{tpu_custom_call.1} parent=0
    _
  %s6 = ssub.s32 1, %s4
  %s7 = scalar_select 0, %s6, %s4
  $region1: #{tpu_custom_call.1} parent=0
    #allocation2 [shape = 'u8[8192]{0}', space=vmem, size = 0x2000, scoped, tag = 'input window, operand 0, single buffered']
    #allocation3 [shape = 's32[1]{0}', space=sflag, size = 0x4, scoped, tag = 'scoped memory for tpu_custom_call.1']
    #allocation4 [shape = 's32[1]{0}', space=sflag, size = 0x4, scoped, tag = 'scoped memory for tpu_custom_call.1']
    #allocation5 [shape = 'u8[16384]{0}', space=vmem, size = 0x4000, scoped, tag = 'input window, operand 1, single buffered']
    #allocation6 [shape = 's32[1]{0}', space=sflag, size = 0x4, scoped, tag = 'scoped memory for tpu_custom_call.1']
    #allocation7 [shape = 'u8[8192]{0}', space=vmem, size = 0x2000, scoped, tag = 'output window, operand 0, single buffered']
    %8 = vsyncpa [#allocation3], 0
    %9 = vsyncpa [#allocation6], 0
    %10 = vsyncpa [#allocation4], 0
    // Predicated region
    $region2: #{tpu_custom_call.1} parent=1 // pred_check
      _
    $region3: #{tpu_custom_call.1} parent=1 // pred_check_branch
      %12 = sbr.rel (0) target = $region5
    $region4: #{tpu_custom_call.1} parent=1 // pred_region
      %s14 = ssub.s32 256, 256
      %15 = vsyncadd [#allocation3], %s14
      %s16 = sshll.u32 [#allocation2], 4
      %s17 = int_to_ptr.vmem [resolvable:$true] %s16
      %22 = dma.hbm_to_vmem [thread:$0]  %s0, 256, %s17, [#allocation3], 128, 128, 8
    $region5: #{tpu_custom_call.1} parent=1 // pred_fallthru
      _
    // Predicated region
    $region6: #{tpu_custom_call.1} parent=1 // pred_check
      _
    $region7: #{tpu_custom_call.1} parent=1 // pred_check_branch
      %24 = sbr.rel (0) target = $region9
    $region8: #{tpu_custom_call.1} parent=1 // pred_region
      %s26 = ssub.s32 512, 512
      %27 = vsyncadd [#allocation6], %s26
      %s28 = sshll.u32 [#allocation5], 4
      %s29 = int_to_ptr.vmem [resolvable:$true] %s28
      %34 = dma.hbm_to_vmem [thread:$0]  %s1, 512, %s29, [#allocation6], 128, 128, 8
    $region9: #{tpu_custom_call.1} parent=1 // pred_fallthru
      _
    // Predicated region
    $region10: #{tpu_custom_call.1} parent=1 // pred_check
      _
    $region11: #{tpu_custom_call.1} parent=1 // pred_check_branch
      %36 = sbr.rel (0) target = $region13
    $region12: #{tpu_custom_call.1} parent=1 // pred_region
      _
    $region13: #{tpu_custom_call.1} parent=1 // pred_fallthru
      _
    // Predicated region
    $region14: #{tpu_custom_call.1} parent=1 // pred_check
      _
    $region15: #{tpu_custom_call.1} parent=1 // pred_check_branch
      %38 = sbr.rel (0) target = $region17
    $region16: #{tpu_custom_call.1} parent=1 // pred_region
      %39 = dma.done [#allocation3], 256
    $region17: #{tpu_custom_call.1} parent=1 // pred_fallthru
      _
    // Predicated region
    $region18: #{tpu_custom_call.1} parent=1 // pred_check
      _
    $region19: #{tpu_custom_call.1} parent=1 // pred_check_branch
      %41 = sbr.rel (0) target = $region21
    $region20: #{tpu_custom_call.1} parent=1 // pred_region
      %42 = dma.done [#allocation6], 512
    $region21: #{tpu_custom_call.1} parent=1 // pred_fallthru
      _
    %v43 = vld [vmem:[#allocation2] sm:$0xff]
    %v44 = vld [vmem:[#allocation2 + $0x8] sm:$0xff]
    %v45 = vld [vmem:[#allocation5] sm:$0xff]
    %v46 = vld [vmem:[#allocation5 + $0x8] sm:$0xff]
    %v47 = vld [vmem:[#allocation5 + $0x10] sm:$0xff]
    %v48 = vld [vmem:[#allocation5 + $0x18] sm:$0xff]
    %v49 = vld [vmem:[%s2] sm:$0x1]
    %v51 = vlaneseq
    %v52 = vshrl.u32 %v51, 7
    %v53 = vsub.s32 0, %v52
    %v54 = vrot.slane %v49, %v53
    %vm56 = vcmask 261120
    %v58 = vsel %vm56, %v43, 0
    %v61 = vsel %vm56, %v44, 0
    %63 = vmatprep.subr.mxu0 0.0
    %64 = vmatpush1.msra.mxu0 %v45
    %65 = vmatprep.subr.mxu0 0.0
    %66 = vmatpush1.msra.mxu0 %v46
    %67 = vmatprep.subr.mxu0 0.0
    %68 = vmatpush1.msra.mxu0 %v47
    %69 = vmatprep.subr.mxu0 0.0
    %70 = vmatpush1.msra.mxu0 %v48
    %71 = vmatprep.subr.mxu0 0.0
    %72 = vmatpush1.msra.mxu0 0.0
    %73 = vmatprep.subr.mxu0 0.0
    %74 = vmatpush1.msra.mxu0 0.0
    %75 = vmatprep.subr.mxu0 0.0
    %76 = vmatpush1.msra.mxu0 0.0
    %77 = vmatprep.subr.mxu0 0.0
    %78 = vmatpush1.msra.mxu0 0.0
    %79 = vmatprep.subr.mxu0 0.0
    %80 = vmatpush1.msra.mxu0 0.0
    %81 = vmatprep.subr.mxu0 0.0
    %82 = vmatpush1.msra.mxu0 0.0
    %83 = vmatprep.subr.mxu0 0.0
    %84 = vmatpush1.msra.mxu0 0.0
    %85 = vmatprep.subr.mxu0 0.0
    %86 = vmatpush1.msra.mxu0 0.0
    %87 = vmatprep.subr.mxu0 0.0
    %88 = vmatpush1.msra.mxu0 0.0
    %89 = vmatprep.subr.mxu0 0.0
    %90 = vmatpush1.msra.mxu0 0.0
    %91 = vmatprep.subr.mxu0 0.0
    %92 = vmatpush1.msra.mxu0 0.0
    %93 = vmatprep.subr.mxu0 0.0
    %94 = vmatpush1.msra.mxu0 0.0
    %95 = vmatprep.subr.mxu0 0.0
    %96 = vmatpush1.msra.mxu0 0.0
    %97 = vmatprep.subr.mxu0 0.0
    %98 = vmatpush1.msra.mxu0 0.0
    %99 = vmatprep.subr.mxu0 0.0
    %100 = vmatpush1.msra.mxu0 0.0
    %101 = vmatprep.subr.mxu0 0.0
    %102 = vmatpush1.msra.mxu0 0.0
    %103 = vmatprep.subr.mxu0 0.0
    %104 = vmatpush1.msra.mxu0 0.0
    %105 = vmatprep.subr.mxu0 0.0
    %106 = vmatpush1.msra.mxu0 0.0
    %107 = vmatprep.subr.mxu0 0.0
    %108 = vmatpush1.msra.mxu0 0.0
    %109 = vmatprep.subr.mxu0 0.0
    %110 = vmatpush1.msra.mxu0 0.0
    %111 = vmatprep.subr.mxu0 0.0
    %112 = vmatpush1.msra.mxu0 0.0
    %113 = vmatprep.subr.mxu0 0.0
    %114 = vmatpush1.msra.mxu0 0.0
    %115 = vmatprep.subr.mxu0 0.0
    %116 = vmatpush1.msra.mxu0 0.0
    %117 = vmatprep.subr.mxu0 0.0
    %118 = vmatpush1.msra.mxu0 0.0
    %119 = vmatprep.subr.mxu0 0.0
    %120 = vmatpush1.msra.mxu0 0.0
    %121 = vmatprep.subr.mxu0 0.0
    %122 = vmatpush1.msra.mxu0 0.0
    %123 = vmatprep.subr.mxu0 0.0
    %124 = vmatpush1.msra.mxu0 0.0
    %125 = vmatprep.subr.mxu0 0.0
    %126 = vmatpush1.msra.mxu0 0.0
    %127 = vmatprep.mubr.f32.mxu0 0.0
    %128 = vmatmul.mubr.f32.gmra.mrb[0].mxu0 %v58
    %v129 = vpop.f32.mrb[0].mxu0
    %v130 = vadd.f32 %v54, %v129
    %v131 = vpop.f32.mrb[0].mxu0
    %132 = vmatprep.mubr.f32.mxu0 0.0
    %133 = vmatmul.mubr.f32.gmra.mrb[0].mxu0 %v61
    %v134 = vpop.f32.mrb[0].mxu0
    %v135 = vadd.f32 %v54, %v134
    %v136 = vpop.f32.mrb[0].mxu0
    %137 = vdwg.mxu0
    %vm138 = vcmask 785408
    %139 = vst.msk [vmem:[#allocation7] sm:$0xff] %vm138, %v130
    %140 = vst.msk [vmem:[#allocation7 + $0x8] sm:$0xff] %vm138, %v135
    // Predicated region
    $region22: #{tpu_custom_call.1} parent=1 // pred_check
      _
    $region23: #{tpu_custom_call.1} parent=1 // pred_check_branch
      %142 = sbr.rel (0) target = $region25
    $region24: #{tpu_custom_call.1} parent=1 // pred_region
      %s144 = ssub.s32 256, 256
      %145 = vsyncadd [#allocation4], %s144
      %s146 = sshll.u32 [#allocation7], 4
      %s147 = int_to_ptr.vmem [resolvable:$true] %s146
      %152 = dma.vmem_to_hbm [thread:$0]  %s147, 256, %s3, [#allocation4], 128, 128, 8
    $region25: #{tpu_custom_call.1} parent=1 // pred_fallthru
      _
    // Predicated region
    $region26: #{tpu_custom_call.1} parent=1 // pred_check
      _
    $region27: #{tpu_custom_call.1} parent=1 // pred_check_branch
      %154 = sbr.rel (0) target = $region29
    $region28: #{tpu_custom_call.1} parent=1 // pred_region
      %155 = dma.done [#allocation4], 256
    $region29: #{tpu_custom_call.1} parent=1 // pred_fallthru
      _
    %156 = vsyncpa [#allocation3], 1
    %157 = vsyncpa [#allocation6], 1
    %158 = vsyncpa [#allocation4], 1

</llo_original>
